<compile_context>
chip_gen: v7x
topology: tpu7x:2x2x1
jax: 0.10.0
libtpu: 0.0.40
codegen_flags: <defaults>
</compile_context>

<pallas_src>
import functools

import jax
import jax.numpy as jnp
from jax import lax
from jax.experimental import pallas as pl
from jax.experimental.pallas import tpu as pltpu

Z_NEAR = 3.0
Z_FAR = 80.0

_LANE = 128


@functools.lru_cache(maxsize=None)
def _budgets():
    """(per-block byte budget, vmem_limit_bytes), generation-aware (perf review)."""
    try:
        kind = jax.devices()[0].device_kind.lower()
    except Exception:
        kind = ""
    gen = 0
    for g in (7, 6, 5, 4):
        if f"v{g}" in kind or f"tpu{g}" in kind:
            gen = g
            break
    if gen >= 7:
        return 6 << 20, 48 << 20      # 64 MiB physical VMEM, 3.2 TB/s HBM
    if gen == 6:
        return 6 << 20, 64 << 20      # 128 MiB physical VMEM
    if gen == 5:
        return 4 << 20, 32 << 20      # modest blocks; raise above 16 MiB scoped default
    return 4 << 20, 32 << 20


def _lane_chunk(extent, bytes_per_lane, budget, min_steps=1):
    """Lane-axis chunk: multiple of 128 (or the full extent), sized so one block fits the
    budget (bytes_per_lane already includes double-buffering).  Optionally capped so the
    lane grid has >= min_steps steps (2-TensorCore coverage on v7x)."""
    if extent * bytes_per_lane <= budget:
        chunk = extent
    else:
        chunk = max(_LANE, (budget // bytes_per_lane) // _LANE * _LANE)
    if min_steps > 1 and extent > _LANE:
        cap = max(_LANE, (extent // min_steps) // _LANE * _LANE)
        chunk = min(chunk, cap)
    return chunk


# ---------------------------------------------------------------------------
# Kernel 1: images * 0.5 + 0.5 (f32 cast fused inside the kernel)
# TODO(synk): once renderer.net.encode is a real Pallas kernel, fuse this affine into its
# input stage so images_alt is never materialized in HBM.
# ---------------------------------------------------------------------------
def _scale_shift_kernel(x_ref, o_ref):
    o_ref[...] = x_ref[...].astype(jnp.float32) * 0.5 + 0.5


def scale_shift(images):
    B, F, C, H, W = images.shape
    R, HW = B * F * C, H * W
    budget, vmem_limit = _budgets()
    flat = images.reshape(R, HW)
    in_b = flat.dtype.itemsize
    # Packed-dtype-aware sublane chunk (8 f32 / 16 bf16 / 32 int8); full extent when the row
    # axis is small (no ragged sublane padding -> effectively one lane-dense grid axis).
    sub = 8 * max(1, 4 // in_b)
    rt = R if R <= 256 else sub
    row_steps = pl.cdiv(R, rt)
    per_lane = rt * (in_b + 4) * 2            # in + f32 out, double-buffered
    ct = _lane_chunk(HW, per_lane, budget, min_steps=2 if row_steps == 1 else 1)
    out = pl.pallas_call(
        _scale_shift_kernel,
        out_shape=jax.ShapeDtypeStruct((R, HW), jnp.float32),
        grid=(row_steps, pl.cdiv(HW, ct)),
        in_specs=[pl.BlockSpec((rt, ct), lambda i, j: (i, j))],
        out_specs=pl.BlockSpec((rt, ct), lambda i, j: (i, j)),
        compiler_params=pltpu.CompilerParams(
            dimension_semantics=("parallel", "parallel"),
            vmem_limit_bytes=vmem_limit),
    )(flat)
    return out.reshape(B, F, C, H, W)


# ---------------------------------------------------------------------------
# Kernel 2: ImageRaySampler.sample ray generation (6 component planes).
# cam row per frame: [R(9, row-major), t(3), 1/fx, 1/fy, cx, cy]
# output layout (kernel native): (6, B*F, H*W) = [origin(3), world dir(3)]
# z_near / z_far are constants and are NOT written (carried as scalars instead).
# ---------------------------------------------------------------------------
def _ray_kernel(cam_ref, xy_ref, out_ref):
    cam = cam_ref[...]                               # (rt, 16)
    x_ndc = xy_ref[0:1, :]                           # (1, ct) frame-invariant, precomputed
    y_ndc = xy_ref[1:2, :]
    X = (x_ndc - cam[:, 14:15]) * cam[:, 12:13]      # (rt, ct)
    Y = (y_ndc - cam[:, 15:16]) * cam[:, 13:14]
    # lax.rsqrt (EUP, approximate) is intentional: ~1e-3 agreement with exact 1/norm.
    inv_n = lax.rsqrt(X * X + Y * Y + 1.0)           # camera-space Z == 1
    Xn = X * inv_n
    Yn = Y * inv_n
    Zn = inv_n
    shp = Xn.shape
    out_ref[0] = jnp.broadcast_to(cam[:, 9:10], shp)   # camera center in base frame
    out_ref[1] = jnp.broadcast_to(cam[:, 10:11], shp)
    out_ref[2] = jnp.broadcast_to(cam[:, 11:12], shp)
    out_ref[3] = cam[:, 0:1] * Xn + cam[:, 1:2] * Yn + cam[:, 2:3] * Zn   # R @ d_cam
    out_ref[4] = cam[:, 3:4] * Xn + cam[:, 4:5] * Yn + cam[:, 5:6] * Zn
    out_ref[5] = cam[:, 6:7] * Xn + cam[:, 7:8] * Yn + cam[:, 8:9] * Zn


def sample_rays(poses_rel, projs, H, W):
    B, F = poses_rel.shape[:2]
    BF, HW = B * F, H * W
    budget, vmem_limit = _budgets()
    Rm = poses_rel[:, :, :3, :3].reshape(BF, 9)
    t = poses_rel[:, :, :3, 3].reshape(BF, 3)
    fx = projs[:, :, 0, 0].reshape(BF, 1)
    fy = projs[:, :, 1, 1].reshape(BF, 1)
    cx = projs[:, :, 0, 2].reshape(BF, 1)
    cy = projs[:, :, 1, 2].reshape(BF, 1)
    # 1/fx, 1/fy computed once on a tiny (BF, 1) vector; the kernel only multiplies.
    cam = jnp.concatenate([Rm, t, 1.0 / fx, 1.0 / fy, cx, cy], axis=1).astype(jnp.float32)

    # Frame-invariant pixel-center NDC grid, computed once (hoisted out of the kernel).
    xs = (jnp.arange(W, dtype=jnp.float32) + 0.5) / W * 2.0 - 1.0
    ys = (jnp.arange(H, dtype=jnp.float32) + 0.5) / H * 2.0 - 1.0
    gy, gx = jnp.meshgrid(ys, xs, indexing="ij")
    xy = jnp.stack([gx.reshape(HW), gy.reshape(HW)], axis=0)           # (2, HW)

    rt = BF if BF <= 8 else 8
    row_steps = pl.cdiv(BF, rt)
    per_lane = (6 * rt + 2) * 4 * 2            # 6 output planes + xy grid, double-buffered
    ct = _lane_chunk(HW, per_lane, budget, min_steps=2 if row_steps == 1 else 1)
    rays = pl.pallas_call(
        _ray_kernel,
        out_shape=jax.ShapeDtypeStruct((6, BF, HW), jnp.float32),
        grid=(row_steps, pl.cdiv(HW, ct)),
        in_specs=[
            pl.BlockSpec((rt, 16), lambda f, c: (f, 0)),
            pl.BlockSpec((2, ct), lambda f, c: (0, c)),
        ],
        out_specs=pl.BlockSpec((6, rt, ct), lambda f, c: (0, f, c)),
        compiler_params=pltpu.CompilerParams(
            dimension_semantics=("parallel", "parallel"),
            vmem_limit_bytes=vmem_limit),
    )(cam, xy)
    # Kernel-native layout; no post-kernel transpose (perf review item 1).
    return rays.reshape(6, B, F * HW)


def rays_to_torch_layout(rays_native, z_near, z_far):
    """Test/export convenience ONLY (full HBM relayout): (6, B, N) -> torch (B, N, 8)."""
    six = jnp.transpose(rays_native, (1, 2, 0))
    B, N = six.shape[:2]
    nf = jnp.broadcast_to(jnp.asarray([z_near, z_far], jnp.float32), (B, N, 2))
    return jnp.concatenate([six, nf], axis=-1)


# ---------------------------------------------------------------------------
# Kernel 3: distance_to_z for coarse AND fine depth in one call (factor computed once)
# ---------------------------------------------------------------------------
def _dist2z_kernel(invk_ref, grid_ref, dc_ref, df_ref, oc_ref, of_ref):
    ik = invk_ref[...]                               # (rt, 9) row-major inv(K) per frame
    gx = grid_ref[0:1, :]                            # (1, ct) frame-invariant linspace grid
    gy = grid_ref[1:2, :]
    cxp = ik[:, 0:1] * gx + ik[:, 1:2] * gy + ik[:, 2:3]
    cyp = ik[:, 3:4] * gx + ik[:, 4:5] * gy + ik[:, 5:6]
    czp = ik[:, 6:7] * gx + ik[:, 7:8] * gy + ik[:, 8:9]
    factor = czp * lax.rsqrt(cxp * cxp + cyp * cyp + czp * czp)
    oc_ref[...] = dc_ref[...].astype(jnp.float32) * factor
    of_ref[...] = df_ref[...].astype(jnp.float32) * factor


def distance_to_z_pair(depth_coarse, depth_fine, projs):
    B, F, H, W = depth_coarse.shape
    BF, HW = B * F, H * W
    budget, vmem_limit = _budgets()
    # TODO(synk): 3x3 matrix inverse (torch.inverse) stays in XLA; no clean Pallas equivalent.
    inv_K = jnp.linalg.inv(projs.astype(jnp.float32)).reshape(BF, 9)

    # Frame-invariant linspace(-1, 1) grid (torch convention), computed once.
    lx = jnp.linspace(-1.0, 1.0, W, dtype=jnp.float32)
    ly = jnp.linspace(-1.0, 1.0, H, dtype=jnp.float32)
    lgy, lgx = jnp.meshgrid(ly, lx, indexing="ij")
    grid_lin = jnp.stack([lgx.reshape(HW), lgy.reshape(HW)], axis=0)   # (2, HW)

    dc = depth_coarse.reshape(BF, HW)
    dfi = depth_fine.reshape(BF, HW)
    rt = BF if BF <= 8 else 8
    row_steps = pl.cdiv(BF, rt)
    per_lane = (4 * rt + 2) * 4 * 2            # 2 depth in + 2 out + grid, double-buffered
    ct = _lane_chunk(HW, per_lane, budget, min_steps=2 if row_steps == 1 else 1)
    zc, zf = pl.pallas_call(
        _dist2z_kernel,
        out_shape=(jax.ShapeDtypeStruct((BF, HW), jnp.float32),
                   jax.ShapeDtypeStruct((BF, HW), jnp.float32)),
        grid=(row_steps, pl.cdiv(HW, ct)),
        in_specs=[
            pl.BlockSpec((rt, 9), lambda f, c: (f, 0)),
            pl.BlockSpec((2, ct), lambda f, c: (0, c)),
            pl.BlockSpec((rt, ct), lambda f, c: (f, c)),
            pl.BlockSpec((rt, ct), lambda f, c: (f, c)),
        ],
        out_specs=(
            pl.BlockSpec((rt, ct), lambda f, c: (f, c)),
            pl.BlockSpec((rt, ct), lambda f, c: (f, c)),
        ),
        compiler_params=pltpu.CompilerParams(
            dimension_semantics=("parallel", "parallel"),
            vmem_limit_bytes=vmem_limit),
    )(inv_K, grid_lin, dc, dfi)
    return zc.reshape(B, F, H, W), zf.reshape(B, F, H, W)


# ---------------------------------------------------------------------------
# BTSWrapper forward (JAX/Pallas)
# ---------------------------------------------------------------------------
class BTSWrapperPallas:
    def __init__(self, config=None):
        config = config or {}
        self.z_near = float(config.get('z_near', 3.0))
        self.z_far = float(config.get('z_far', 80.0))

    @staticmethod
    def get_loss_metric_names():
        return ['loss', 'loss_l2', 'loss_mask', 'loss_temporal']

    def _stub_render(self, rays_native):
        # TODO(synk): self.renderer is an external NeRF-style network passed to __init__;
        # its forward pass is not part of this module.  It consumes the kernel-native
        # (6, B, N) rays layout plus z_near / z_far scalars.
        _, B, N = rays_native.shape
        mid = 0.5 * (self.z_near + self.z_far)
        return {'coarse': {
            'rgb': jnp.zeros((B, N, 3), jnp.float32),
            'depth': jnp.full((B, N), mid, jnp.float32),
            'weights': jnp.zeros((B, N, 8), jnp.float32),
            'alphas': jnp.zeros((B, N, 8), jnp.float32),
        }}

    def forward(self, data):
        data = dict(data)
        images = jnp.stack(data['imgs'], axis=1)                       # (B, F, C, H, W)
        poses = jnp.stack(data['poses'], axis=1).astype(jnp.float32)   # (B, F, 4, 4)
        projs = jnp.stack(data['projs'], axis=1).astype(jnp.float32)   # (B, F, 3, 3)
        B, F, C, H, W = images.shape

        # to_base_pose = inverse(poses[:, :1]); poses = to_base_pose @ poses
        # Kept in XLA on purpose (a few hundred bytes of 4x4 math).
        to_base = jnp.linalg.inv(poses[:, 0])
        poses_rel = jnp.einsum('bij,bfjk->bfik', to_base, poses)

        # TODO(synk): renderer.net.compute_grid_transforms / renderer.net.encode are external
        # encoder modules; not translatable from this wrapper alone.
        images_alt = scale_shift(images)                               # Pallas kernel 1

        # ImageRaySampler.sample — rays in kernel-native layout (6, B, F*H*W):
        # rays_torch[b, n, k] == rays[k, b, n] for k < 6; k=6 -> z_near, k=7 -> z_far scalars.
        all_rays = sample_rays(poses_rel, projs, H, W)                 # Pallas kernel 2
        # rgb_gt in kernel-native channel-major layout (B, F, C, H*W) — free view of
        # images_alt, no minor-dim-3 transpose:
        # rgb_gt_torch[b, f*H*W + p, c] == rgb_gt[b, f, c, p].
        all_rgb_gt = images_alt.reshape(B, F, C, H * W)

        data['fine'] = []
        data['coarse'] = []
        render_dict = self._stub_render(all_rays)
        if 'fine' not in render_dict:
            render_dict['fine'] = dict(render_dict['coarse'])
        render_dict['rgb_gt'] = all_rgb_gt
        render_dict['rays'] = all_rays

        # sampler.reconstruct (pure reshape glue)
        for key in ('coarse', 'fine'):
            d = dict(render_dict[key])
            d['depth'] = d['depth'].reshape(B, F, H, W)
            d['rgb'] = d['rgb'].reshape(B, F, H, W, 3)
            render_dict[key] = d

        # Merged coarse+fine distance_to_z (single Pallas call)         # Pallas kernel 3
        z_c, z_f = distance_to_z_pair(render_dict['coarse']['depth'],
                                      render_dict['fine']['depth'], projs)
        render_dict['coarse']['depth'] = z_c
        render_dict['fine']['depth'] = z_f

        data['fine'].append(render_dict['fine'])
        data['coarse'].append(render_dict['coarse'])
        data['rgb_gt'] = render_dict['rgb_gt']
        data['rays'] = render_dict['rays']
        data['z_near'] = jnp.asarray(self.z_near, jnp.float32)
        data['z_far'] = jnp.asarray(self.z_far, jnp.float32)
        return data


# ---------------------------------------------------------------------------
# main
# ---------------------------------------------------------------------------
if __name__ == "__main__":
    key = jax.random.PRNGKey(0)
    B, F, C, H, W = 2, 2, 3, 16, 16
    k_img, k_pose = jax.random.split(key)

    imgs = [jax.random.uniform(jax.random.fold_in(k_img, f), (B, C, H, W),
                               jnp.float32, minval=-1.0, maxval=1.0) for f in range(F)]
    poses_list = []
    for f in range(F):
        ang = 0.1 * (f + 1)
        ca, sa = jnp.cos(ang), jnp.sin(ang)
        Rm = jnp.array([[ca, -sa, 0.0], [sa, ca, 0.0], [0.0, 0.0, 1.0]], jnp.float32)
        tr = jax.random.normal(jax.random.fold_in(k_pose, f), (B, 3), jnp.float32) * 0.5
        P = jnp.tile(jnp.eye(4, dtype=jnp.float32)[None], (B, 1, 1))
        P = P.at[:, :3, :3].set(jnp.broadcast_to(Rm, (B, 3, 3)))
        P = P.at[:, :3, 3].set(tr)
        poses_list.append(P)
    projs_list = []
    for f in range(F):
        fx, fy = 0.7 + 0.05 * f, 0.9 - 0.03 * f
        cx, cy = 0.02 * f, -0.01 * f
        K = jnp.array([[fx, 0.0, cx], [0.0, fy, cy], [0.0, 0.0, 1.0]], jnp.float32)
        projs_list.append(jnp.tile(K[None], (B, 1, 1)))

    data = {'imgs': imgs, 'poses': poses_list, 'projs': projs_list}
    wrapper = BTSWrapperPallas({'z_near': Z_NEAR, 'z_far': Z_FAR})
    out = wrapper.forward(data)
    jax.block_until_ready(out['rays'])
    jax.block_until_ready(out['rgb_gt'])
    jax.block_until_ready(out['coarse'][0]['depth'])

    # ---- lightweight plain-JAX reference checks (test-only relayouts) ----------
    images_s = jnp.stack(imgs, 1)
    poses_s = jnp.stack(poses_list, 1)
    projs_s = jnp.stack(projs_list, 1)
    inv0 = jnp.linalg.inv(poses_s[:, 0])
    poses_rel_ref = jnp.einsum('bij,bfjk->bfik', inv0, poses_s)

    # rays reference (torch convention (B, N, 8))
    xs = (jnp.arange(W) + 0.5) / W * 2.0 - 1.0
    ys = (jnp.arange(H) + 0.5) / H * 2.0 - 1.0
    gy, gx = jnp.meshgrid(ys, xs, indexing='ij')
    fx_ = projs_s[..., 0, 0][..., None, None]
    fy_ = projs_s[..., 1, 1][..., None, None]
    cx_ = projs_s[..., 0, 2][..., None, None]
    cy_ = projs_s[..., 1, 2][..., None, None]
    Xr = (gx[None, None] - cx_) / fx_
    Yr = (gy[None, None] - cy_) / fy_
    Zr = jnp.ones_like(Xr)
    d = jnp.stack([Xr, Yr, Zr], -1)
    d = d / jnp.linalg.norm(d, axis=-1, keepdims=True)
    dw = jnp.einsum('bfij,bfhwj->bfhwi', poses_rel_ref[..., :3, :3], d)
    org = jnp.broadcast_to(poses_rel_ref[:, :, None, None, :3, 3], dw.shape)
    near = jnp.full(dw.shape[:-1] + (1,), Z_NEAR)
    far = jnp.full(dw.shape[:-1] + (1,), Z_FAR)
    rays_ref = jnp.concatenate([org, dw, near, far], -1).reshape(B, F * H * W, 8)
    rays_torch = rays_to_torch_layout(out['rays'], Z_NEAR, Z_FAR)   # (B, N, 8) for the check
    assert out['rays'].shape == (6, B, F * H * W)
    assert jnp.allclose(rays_torch, rays_ref, atol=1e-3)

    # rgb_gt reference (kernel-native channel-major layout + mapping to the torch layout)
    rgb_gt_native_ref = (images_s * 0.5 + 0.5).reshape(B, F, C, H * W)
    assert jnp.allclose(out['rgb_gt'], rgb_gt_native_ref, atol=1e-5)
    rgb_gt_torch = jnp.transpose(out['rgb_gt'].reshape(B, F, C, H, W),
                                 (0, 1, 3, 4, 2)).reshape(B, F * H * W, C)
    rgb_gt_torch_ref = jnp.transpose(images_s * 0.5 + 0.5, (0, 1, 3, 4, 2)).reshape(B, F * H * W, C)
    assert jnp.allclose(rgb_gt_torch, rgb_gt_torch_ref, atol=1e-5)

    # distance_to_z reference (stub renderer depth is constant mid distance)
    inv_K = jnp.linalg.inv(projs_s)
    lx = jnp.linspace(-1.0, 1.0, W)
    ly = jnp.linspace(-1.0, 1.0, H)
    lgy, lgx = jnp.meshgrid(ly, lx, indexing='ij')
    pts = jnp.stack([lgx, lgy, jnp.ones_like(lgx)], axis=0)                # (3, H, W)
    cam = jnp.einsum('bfij,jhw->bfihw', inv_K, pts)
    fac = cam[:, :, 2] / jnp.linalg.norm(cam, axis=2)
    depth_ref = (0.5 * (Z_NEAR + Z_FAR)) * fac
    assert jnp.allclose(out['coarse'][0]['depth'], depth_ref, atol=1e-3)
    assert jnp.allclose(out['fine'][0]['depth'], depth_ref, atol=1e-3)

    print("KERNEL_OK")
</pallas_src>

<mosaic_0001>
module attributes {stable_mosaic.version = 11 : i64} {
  func.func @_scale_shift_kernel(%arg0: i32, %arg1: i32, %arg2: memref<12x128xf32, #tpu.memory_space<vmem>>, %arg3: memref<12x128xf32, #tpu.memory_space<vmem>>) attributes {dimension_semantics = [#tpu.dimension_semantics<parallel>, #tpu.dimension_semantics<parallel>], iteration_bounds = array<i64: 1, 2>, scalar_prefetch = 0 : i64, scratch_operands = 0 : i64, tpu.core_type = #tpu.core_type<tc>, window_params = [{transform_indices = @transform_0, window_bounds = array<i64: 12, 128>}, {transform_indices = @transform_1, window_bounds = array<i64: 12, 128>}]} {
    %c0 = arith.constant 0 : index
    %c0_0 = arith.constant 0 : index
    %0 = vector.load %arg2[%c0, %c0_0] : memref<12x128xf32, #tpu.memory_space<vmem>>, vector<12x128xf32>
    %cst = arith.constant 5.000000e-01 : f32
    %1 = vector.broadcast %cst : f32 to vector<12x128xf32>
    %2 = arith.mulf %0, %1 : vector<12x128xf32>
    %cst_1 = arith.constant 5.000000e-01 : f32
    %3 = vector.broadcast %cst_1 : f32 to vector<12x128xf32>
    %4 = arith.addf %2, %3 : vector<12x128xf32>
    %c0_2 = arith.constant 0 : index
    %c0_3 = arith.constant 0 : index
    %5 = vector.load %arg3[%c0_2, %c0_3] : memref<12x128xf32, #tpu.memory_space<vmem>>, vector<12x128xf32>
    tpu.vector_store %arg3[%c0_2, %c0_3], %4 {strides = array<i32>} : memref<12x128xf32, #tpu.memory_space<vmem>>, vector<12x128xf32>,
    return
  }
  func.func @transform_0(%arg0: i32, %arg1: i32) -> (i32, i32) {
    %c0_i32 = arith.constant 0 : i32
    return %arg0, %arg1 : i32, i32
  }
  func.func @transform_1(%arg0: i32, %arg1: i32) -> (i32, i32) {
    %c0_i32 = arith.constant 0 : i32
    return %arg0, %arg1 : i32, i32
  }
}

</mosaic_0001>

<llo_original>
// kernel: tpu_custom_call.1
$region0: #{tpu_custom_call.1}
  #allocation0 [shape = 'u32[]', space=smem, size = 0x4, offset = 0x4, fixed_abs, tag = 'smem constant byte address 0x4 - core index']
  #allocation1 [shape = 'u32[144,128]{1,0:T(1,128)}', space=vmem, size = 0x12000, scoped, tag = 'internal scratch']
  %s0 = inlined_call_operand.hbm [shape: f32[12,256], index: 0, kind: input, shape index: {}]
  %s1 = inlined_call_operand.hbm [shape: f32[12,256], index: 1, kind: output, shape index: {}]
  %s2 = sld [smem:[#allocation0]]
  $region41: #{tpu_custom_call.1} parent=0
    _
  %s4 = ssub.s32 1, %s2
  %s5 = scalar_select 0, %s4, %s2
  $region1: #{tpu_custom_call.1} parent=0
    #allocation2 [shape = 'u8[16384]{0}', space=vmem, size = 0x4000, scoped, tag = 'input window, operand 0']
    #allocation3 [shape = 's32[2]{0}', space=sflag, size = 0x8, scoped, tag = 'scoped memory for tpu_custom_call.1']
    #allocation4 [shape = 's32[2]{0}', space=sflag, size = 0x8, scoped, tag = 'scoped memory for tpu_custom_call.1']
    #allocation5 [shape = 'u8[16384]{0}', space=vmem, size = 0x4000, scoped, tag = 'output window, operand 0']
    %6 = vsyncpa [#allocation3], 0
    %s7 = scalar_lea.sflag [#allocation3], 1
    %8 = vsyncpa %s7, 0
    %9 = vsyncpa [#allocation4], 0
    %s10 = scalar_lea.sflag [#allocation4], 1
    %11 = vsyncpa %s10, 0
    loop: start=0, step=1, limit=4
    $region2: #{tpu_custom_call.1} parent=1 // loop_pre_header
      _
    $region3: #{tpu_custom_call.1} parent=1 // loop_header
      %s13 = sphi 0, %s17
      %p14 = scmp.ge.s32.totalorder %s13, 4
      %s20 = sphi 0, %s32
      %s21 = sphi 0, %s28
      %s22 = sphi 0, %s20
      %s23 = sphi 0, %s21
      %s24 = sphi 0, %s22
      %s25 = sphi 0, %s23
      %s37 = sphi 0, %s39
      %s40 = sphi 0, %s37
      %s41 = sphi 0, %s40
      %s57 = sphi 0, %s41
      %s65 = sphi 0, %s67
      %s68 = sphi 0, %s65
      %s69 = sphi 0, %s68
      %s85 = sphi 0, %s69
    $region4: #{tpu_custom_call.1} parent=1 // loop_header_branch
      %16 = sbr.rel (%p14) target = $region8
    $region5: #{tpu_custom_call.1} parent=1 // loop_body
      %s18 = ssub.s32 %s13, 1
      %s19 = ssub.s32 %s13, 2
      %s26 = sadd.s32 1, %s21
      %p27 = scmp.ge.s32.totalorder %s26, 2
      %s28 = scalar_select %p27, 0, %s26
      %s29 = sadd.s32 1, %s20
      %s30 = scalar_select %p27, %s29, %s20
      %p31 = scmp.ge.s32.totalorder %s30, 1
      %s32 = scalar_select %p31, 0, %s30
      %s33 = ssub.s32 %s20, %s32
      %s34 = ssub.s32 %s21, %s28
      %s35 = sor.u32 %s33, %s34
      %p36 = scmp.eq.s32.totalorder %s35, 0
      %s38 = sadd.s32 %s37, 1
      %s39 = scalar_select %p36, %s37, %s38
      %p42 = pneg %p36
      %p43 = scmp.eq.s32.totalorder %s13, 1
      %p44 = por %p42, %p43
      %p45 = scmp.ne.s32.totalorder %s37, %s40
      %p46 = scmp.eq.s32.totalorder %s13, 0
      %p47 = por %p45, %p46
      %p48 = scmp.ne.s32.totalorder %s37, %s40
      %p49 = scmp.eq.s32.totalorder %s18, 1
      %p50 = por %p48, %p49
      %p51 = scmp.ne.s32.totalorder %s40, %s41
      %p52 = scmp.eq.s32.totalorder %s18, 0
      %p53 = por %p51, %p52
      %p54 = scmp.ne.s32.totalorder %s40, %s41
      %p55 = scmp.eq.s32.totalorder %s19, 1
      %p56 = por %p54, %p55
      %p58 = scmp.ne.s32.totalorder %s41, %s57
      %p59 = scmp.eq.s32.totalorder %s19, 0
      %p60 = por %p58, %p59
      %s61 = ssub.s32 %s20, %s32
      %s62 = ssub.s32 %s21, %s28
      %s63 = sor.u32 %s61, %s62
      %p64 = scmp.eq.s32.totalorder %s63, 0
      %s66 = sadd.s32 %s65, 1
      %s67 = scalar_select %p64, %s65, %s66
      %p70 = pneg %p64
      %p71 = scmp.eq.s32.totalorder %s13, 1
      %p72 = por %p70, %p71
      %p73 = scmp.ne.s32.totalorder %s65, %s68
      %p74 = scmp.eq.s32.totalorder %s13, 0
      %p75 = por %p73, %p74
      %p76 = scmp.ne.s32.totalorder %s65, %s68
      %p77 = scmp.eq.s32.totalorder %s18, 1
      %p78 = por %p76, %p77
      %p79 = scmp.ne.s32.totalorder %s68, %s69
      %p80 = scmp.eq.s32.totalorder %s18, 0
      %p81 = por %p79, %p80
      %p82 = scmp.ne.s32.totalorder %s68, %s69
      %p83 = scmp.eq.s32.totalorder %s19, 1
      %p84 = por %p82, %p83
      %p86 = scmp.ne.s32.totalorder %s69, %s85
      %p87 = scmp.eq.s32.totalorder %s19, 0
      %p88 = por %p86, %p87
      %p89 = scmp.le.s32.totalorder 1, %s13
      %p90 = scmp.lt.s32.totalorder %s13, 3
      %p91 = pnand %p89, %p90
      %p92 = pneg %p91
      // Predicated region
      $region9: #{tpu_custom_call.1} parent=5 // pred_check
        _
      $region10: #{tpu_custom_call.1} parent=5 // pred_check_branch
        %94 = sbr.rel (%p91) target = $region12
      $region11: #{tpu_custom_call.1} parent=5 // pred_region
        %s95 = ssub.s32 %s13, 1
      $region12: #{tpu_custom_call.1} parent=5 // pred_fallthru
        _
      %p96 = scmp.lt.s32.totalorder %s13, 2
      // Predicated region
      $region13: #{tpu_custom_call.1} parent=5 // pred_check
        %p97 = pneg %p96
      $region14: #{tpu_custom_call.1} parent=5 // pred_check_branch
        %99 = sbr.rel (%p97) target = $region16
      $region15: #{tpu_custom_call.1} parent=5 // pred_region
        // Predicated region
        $region17: #{tpu_custom_call.1} parent=15 // pred_check
          %p100 = pneg %p47
        $region18: #{tpu_custom_call.1} parent=15 // pred_check_branch
          %102 = sbr.rel (%p100) target = $region20
        $region19: #{tpu_custom_call.1} parent=15 // pred_region
          %s103 = sand.u32 %s37, 1
          %s104 = scalar_lea.sflag [#allocation3], %s103
          %s105 = sand.u32 %s37, 1
          %s106 = smul.addr %s105, 16
          %s107 = scalar_lea.vmem [#allocation2], %s106
          %s108 = smul.u32 2, %s20
          %s110 = ssub.s32 256, 256
          %111 = vsyncadd %s104, %s110
          %s112 = smul.addr %s108, 2
          %s113 = sadd.s32 %s21, %s112
          %s114 = smul.addr %s113, 128
          %s115 = scalar_lea.hbm %s0, %s114
          %s116 = sshll.u32 %s107, 4
          %s117 = int_to_ptr.vmem [resolvable:$true] %s116
          %122 = dma.hbm_to_vmem [thread:$0]  %s115, 256, %s117, %s104, 256, 128, 8
        $region20: #{tpu_custom_call.1} parent=15 // pred_fallthru
          _
      $region16: #{tpu_custom_call.1} parent=5 // pred_fallthru
        _
      %p123 = scmp.le.s32.totalorder 1, %s13
      %p124 = scmp.lt.s32.totalorder %s13, 3
      %p125 = pnand %p123, %p124
      %p126 = pneg %p125
      // Predicated region
      $region21: #{tpu_custom_call.1} parent=5 // pred_check
        _
      $region22: #{tpu_custom_call.1} parent=5 // pred_check_branch
        %128 = sbr.rel (%p125) target = $region24
      $region23: #{tpu_custom_call.1} parent=5 // pred_region
        %s129 = ssub.s32 %s13, 1
        %s130 = sand.u32 %s40, 1
        %s131 = scalar_lea.sflag [#allocation3], %s130
        %s132 = sand.u32 %s40, 1
        %s133 = smul.addr %s132, 16
        %s134 = scalar_lea.vmem [#allocation2], %s133
        // Predicated region
        $region25: #{tpu_custom_call.1} parent=23 // pred_check
          %p135 = pneg %p53
        $region26: #{tpu_custom_call.1} parent=23 // pred_check_branch
          %137 = sbr.rel (%p135) target = $region28
        $region27: #{tpu_custom_call.1} parent=23 // pred_region
          %138 = dma.done %s131, 256
        $region28: #{tpu_custom_call.1} parent=23 // pred_fallthru
          _
        %s139 = sand.u32 %s40, 1
        %s140 = scalar_lea.sflag [#allocation3], %s139
        %s141 = sand.u32 %s40, 1
        %s142 = smul.addr %s141, 16
        %s143 = scalar_lea.vmem [#allocation2], %s142
        %p144 = pneg %p53
        %p145 = pneg %p50
        %p146 = pneg %p81
        %p147 = pneg %p78
        %s148 = sand.u32 %s68, 1
        %s149 = scalar_lea.sflag [#allocation4], %s148
        %s150 = sand.u32 %s68, 1
        %s151 = smul.addr %s150, 16
        %s152 = scalar_lea.vmem [#allocation5], %s151
        %s153 = smul.u32 2, %s22
        %s154 = smul.u32 2, %s22
        %v155 = vld [vmem:[%s134] sm:$0xff]
        %v156 = vld [vmem:[%s134 + $0x8] sm:$0xf]
        %v157 = vmul.f32 %v155, 0.5
        %v158 = vmul.f32 %v156, 0.5
        %v159 = vadd.f32 %v157, 0.5
        %v160 = vadd.f32 %v158, 0.5
        %161 = vst [vmem:[%s152] sm:$0xff] %v159
        %162 = vst [vmem:[%s152 + $0x8] sm:$0xf] %v160
        %s163 = sand.u32 %s68, 1
        %s164 = scalar_lea.sflag [#allocation4], %s163
        %s165 = sand.u32 %s68, 1
        %s166 = smul.addr %s165, 16
        %s167 = scalar_lea.vmem [#allocation5], %s166
        // Predicated region
        $region29: #{tpu_custom_call.1} parent=23 // pred_check
          %p168 = pneg %p78
        $region30: #{tpu_custom_call.1} parent=23 // pred_check_branch
          %170 = sbr.rel (%p168) target = $region32
        $region31: #{tpu_custom_call.1} parent=23 // pred_region
          %s171 = smul.u32 2, %s22
          %s173 = ssub.s32 256, 256
          %174 = vsyncadd %s164, %s173
          %s175 = smul.addr %s171, 2
          %s176 = sadd.s32 %s23, %s175
          %s177 = smul.addr %s176, 128
          %s178 = scalar_lea.hbm %s1, %s177
          %s179 = sshll.u32 %s167, 4
          %s180 = int_to_ptr.vmem [resolvable:$true] %s179
          %185 = dma.vmem_to_hbm [thread:$0]  %s180, 256, %s178, %s164, 128, 256, 8
        $region32: #{tpu_custom_call.1} parent=23 // pred_fallthru
          _
      $region24: #{tpu_custom_call.1} parent=5 // pred_fallthru
        _
      %p186 = scmp.le.s32.totalorder 2, %s13
      // Predicated region
      $region33: #{tpu_custom_call.1} parent=5 // pred_check
        %p187 = pneg %p186
      $region34: #{tpu_custom_call.1} parent=5 // pred_check_branch
        %189 = sbr.rel (%p187) target = $region36
      $region35: #{tpu_custom_call.1} parent=5 // pred_region
        %s190 = ssub.s32 %s13, 2
        // Predicated region
        $region37: #{tpu_custom_call.1} parent=35 // pred_check
          %p191 = pneg %p84
        $region38: #{tpu_custom_call.1} parent=35 // pred_check_branch
          %193 = sbr.rel (%p191) target = $region40
        $region39: #{tpu_custom_call.1} parent=35 // pred_region
          %s194 = sand.u32 %s69, 1
          %s195 = scalar_lea.sflag [#allocation4], %s194
          %s196 = sand.u32 %s69, 1
          %s197 = smul.addr %s196, 16
          %s198 = scalar_lea.vmem [#allocation5], %s197
          %199 = dma.done %s195, 256
        $region40: #{tpu_custom_call.1} parent=35 // pred_fallthru
          _
      $region36: #{tpu_custom_call.1} parent=5 // pred_fallthru
        _
    $region6: #{tpu_custom_call.1} parent=1 // loop_footer
      %s17 = sadd.s32 1, %s13
    $region7: #{tpu_custom_call.1} parent=1 // loop_footer_branch
      %12 = sbr.rel target = $region3
    $region8: #{tpu_custom_call.1} parent=1 // loop_exit
      _
    %200 = vsyncpa [#allocation3], 1
    %s201 = scalar_lea.sflag [#allocation3], 1
    %202 = vsyncpa %s201, 1
    %203 = vsyncpa [#allocation4], 1
    %s204 = scalar_lea.sflag [#allocation4], 1
    %205 = vsyncpa %s204, 1

</llo_original>
